<compile_context>
chip_gen: v7x
topology: tpu7x:2x2x1
jax: 0.10.0
libtpu: 0.0.40
codegen_flags: <defaults>
</compile_context>

<pallas_src>
import functools

import jax
import jax.numpy as jnp
from jax.experimental import pallas as pl
from jax.experimental.pallas import tpu as pltpu


# ---------------------------------------------------------------------------
# Pallas kernel: temporal shift on one (nb_blk, T, C, hw_tile) block.
# All slice bounds are static Python ints -> static sliced loads/stores,
# no concatenation temporaries.
# ---------------------------------------------------------------------------
def _tsm_kernel(x_ref, o_ref, *, fold):
    nb_blk, T, C, hw = o_ref.shape
    f1 = min(fold, C)            # group 1: [0, f1)
    f2 = min(2 * fold, C)        # group 2: [f1, f2); group 3: [f2, C)

    def _zeros(nc):
        return jnp.zeros((nb_blk, 1, nc, hw), o_ref.dtype)

    # group 1: out[t] = x[t+1], last frame zero
    if f1 > 0:
        if T > 1:
            o_ref[:, 0:T - 1, 0:f1, :] = x_ref[:, 1:T, 0:f1, :]
        o_ref[:, T - 1:T, 0:f1, :] = _zeros(f1)

    # group 2: out[t] = x[t-1], first frame zero
    if f2 > f1:
        if T > 1:
            o_ref[:, 1:T, f1:f2, :] = x_ref[:, 0:T - 1, f1:f2, :]
        o_ref[:, 0:1, f1:f2, :] = _zeros(f2 - f1)

    # group 3: straight copy
    if C > f2:
        o_ref[:, :, f2:C, :] = x_ref[:, :, f2:C, :]


def _choose_tiles(nb, T, C, hw, itemsize, budget_bytes=2 << 20):
    """Pick (clips per block, H*W tile) so a block stays <= ~budget each way."""
    per_lane = T * C * itemsize                    # bytes per lane column, 1 clip
    if hw <= 128 or per_lane * hw <= budget_bytes:
        hw_tile = hw                               # full H*W (ok even if %128 != 0)
    else:
        hw_tile = max(128, (budget_bytes // per_lane) // 128 * 128)
    clip_bytes = per_lane * hw_tile
    nb_blk = int(max(1, min(nb, budget_bytes // max(clip_bytes, 1))))
    return nb_blk, hw_tile


def tsm_forward(x, n_segment=10, fold_div=3):
    """TSM forward matching the PyTorch module. x: (nt, c, h, w)."""
    nt, c, h, w = x.shape
    assert nt % n_segment == 0, "nt must be divisible by n_segment"
    nb, T = nt // n_segment, n_segment
    fold = c // fold_div
    if fold == 0:
        # PyTorch: out[:, :, 0:] = x  -> pure copy
        return x

    hw = h * w
    xr = x.reshape(nb, T, c, hw)                   # pure view of NCHW layout
    nb_blk, hw_tile = _choose_tiles(nb, T, c, hw, x.dtype.itemsize)

    out = pl.pallas_call(
        functools.partial(_tsm_kernel, fold=fold),
        out_shape=jax.ShapeDtypeStruct((nb, T, c, hw), x.dtype),
        grid=(pl.cdiv(nb, nb_blk), pl.cdiv(hw, hw_tile)),
        in_specs=[pl.BlockSpec((nb_blk, T, c, hw_tile),
                               lambda i, j: (i, 0, 0, j))],
        out_specs=pl.BlockSpec((nb_blk, T, c, hw_tile),
                               lambda i, j: (i, 0, 0, j)),
        compiler_params=pltpu.CompilerParams(
            dimension_semantics=("parallel", "parallel")),
    )(xr)
    return out.reshape(nt, c, h, w)


# ---------------------------------------------------------------------------
# Pure-JAX reference (mirrors the PyTorch module exactly)
# ---------------------------------------------------------------------------
def tsm_reference(x, n_segment, fold_div):
    nt, c, h, w = x.shape
    nb = nt // n_segment
    xv = x.reshape(nb, n_segment, c, h, w)
    fold = c // fold_div
    out = jnp.zeros_like(xv)
    if fold > 0:
        out = out.at[:, :-1, :fold].set(xv[:, 1:, :fold])
        out = out.at[:, 1:, fold:2 * fold].set(xv[:, :-1, fold:2 * fold])
    out = out.at[:, :, 2 * fold:].set(xv[:, :, 2 * fold:])
    return out.reshape(nt, c, h, w)


if __name__ == "__main__":
    key = jax.random.PRNGKey(0)
    k1, k2 = jax.random.split(key)

    # Case 1: module defaults (n_segment=10, fold_div=3), 2 clips of 10 frames.
    x1 = jax.random.normal(k1, (20, 6, 16, 16), jnp.float32)
    y1 = tsm_forward(x1, n_segment=10, fold_div=3)
    r1 = tsm_reference(x1, 10, 3)

    # Case 2: awkward shapes (C not a multiple of 8, H*W not a multiple of 128).
    x2 = jax.random.normal(k2, (8, 5, 12, 12), jnp.float32)
    y2 = tsm_forward(x2, n_segment=4, fold_div=3)
    r2 = tsm_reference(x2, 4, 3)

    jax.block_until_ready((y1, y2))
    assert y1.shape == x1.shape and y2.shape == x2.shape
    assert jnp.array_equal(y1, r1), "TSM mismatch vs reference (case 1)"
    assert jnp.array_equal(y2, r2), "TSM mismatch vs reference (case 2)"
    print("KERNEL_OK")
</pallas_src>

<mosaic_0001>
module attributes {stable_mosaic.version = 11 : i64} {
  func.func @_tsm_kernel(%arg0: i32, %arg1: i32, %arg2: memref<2x10x6x256xf32, #tpu.memory_space<vmem>>, %arg3: memref<2x10x6x256xf32, #tpu.memory_space<vmem>>) attributes {dimension_semantics = [#tpu.dimension_semantics<parallel>, #tpu.dimension_semantics<parallel>], iteration_bounds = array<i64: 1, 1>, scalar_prefetch = 0 : i64, scratch_operands = 0 : i64, tpu.core_type = #tpu.core_type<tc>, window_params = [{transform_indices = @transform_0, window_bounds = array<i64: 2, 10, 6, 256>}, {transform_indices = @transform_1, window_bounds = array<i64: 2, 10, 6, 256>}]} {
    %c0 = arith.constant 0 : index
    %c1 = arith.constant 1 : index
    %c0_0 = arith.constant 0 : index
    %c0_1 = arith.constant 0 : index
    %0 = vector.load %arg2[%c0, %c1, %c0_0, %c0_1] : memref<2x10x6x256xf32, #tpu.memory_space<vmem>>, vector<2x9x2x256xf32>
    %c0_2 = arith.constant 0 : index
    %c0_3 = arith.constant 0 : index
    %c0_4 = arith.constant 0 : index
    %c0_5 = arith.constant 0 : index
    %1 = vector.load %arg3[%c0_2, %c0_3, %c0_4, %c0_5] : memref<2x10x6x256xf32, #tpu.memory_space<vmem>>, vector<2x9x2x256xf32>
    tpu.vector_store %arg3[%c0_2, %c0_3, %c0_4, %c0_5], %0 {strides = array<i32>} : memref<2x10x6x256xf32, #tpu.memory_space<vmem>>, vector<2x9x2x256xf32>,
    %cst = arith.constant 0.000000e+00 : f32
    %2 = vector.broadcast %cst : f32 to vector<2x1x2x256xf32>
    %c0_6 = arith.constant 0 : index
    %c9 = arith.constant 9 : index
    %c0_7 = arith.constant 0 : index
    %c0_8 = arith.constant 0 : index
    %3 = vector.load %arg3[%c0_6, %c9, %c0_7, %c0_8] : memref<2x10x6x256xf32, #tpu.memory_space<vmem>>, vector<2x1x2x256xf32>
    tpu.vector_store %arg3[%c0_6, %c9, %c0_7, %c0_8], %2 {strides = array<i32>} : memref<2x10x6x256xf32, #tpu.memory_space<vmem>>, vector<2x1x2x256xf32>,
    %c0_9 = arith.constant 0 : index
    %c0_10 = arith.constant 0 : index
    %c2 = arith.constant 2 : index
    %c0_11 = arith.constant 0 : index
    %4 = vector.load %arg2[%c0_9, %c0_10, %c2, %c0_11] : memref<2x10x6x256xf32, #tpu.memory_space<vmem>>, vector<2x9x2x256xf32>
    %c0_12 = arith.constant 0 : index
    %c1_13 = arith.constant 1 : index
    %c2_14 = arith.constant 2 : index
    %c0_15 = arith.constant 0 : index
    %5 = vector.load %arg3[%c0_12, %c1_13, %c2_14, %c0_15] : memref<2x10x6x256xf32, #tpu.memory_space<vmem>>, vector<2x9x2x256xf32>
    tpu.vector_store %arg3[%c0_12, %c1_13, %c2_14, %c0_15], %4 {strides = array<i32>} : memref<2x10x6x256xf32, #tpu.memory_space<vmem>>, vector<2x9x2x256xf32>,
    %cst_16 = arith.constant 0.000000e+00 : f32
    %6 = vector.broadcast %cst_16 : f32 to vector<2x1x2x256xf32>
    %c0_17 = arith.constant 0 : index
    %c0_18 = arith.constant 0 : index
    %c2_19 = arith.constant 2 : index
    %c0_20 = arith.constant 0 : index
    %7 = vector.load %arg3[%c0_17, %c0_18, %c2_19, %c0_20] : memref<2x10x6x256xf32, #tpu.memory_space<vmem>>, vector<2x1x2x256xf32>
    tpu.vector_store %arg3[%c0_17, %c0_18, %c2_19, %c0_20], %6 {strides = array<i32>} : memref<2x10x6x256xf32, #tpu.memory_space<vmem>>, vector<2x1x2x256xf32>,
    %c0_21 = arith.constant 0 : index
    %c0_22 = arith.constant 0 : index
    %c4 = arith.constant 4 : index
    %c0_23 = arith.constant 0 : index
    %8 = vector.load %arg2[%c0_21, %c0_22, %c4, %c0_23] : memref<2x10x6x256xf32, #tpu.memory_space<vmem>>, vector<2x10x2x256xf32>
    %c0_24 = arith.constant 0 : index
    %c0_25 = arith.constant 0 : index
    %c4_26 = arith.constant 4 : index
    %c0_27 = arith.constant 0 : index
    %9 = vector.load %arg3[%c0_24, %c0_25, %c4_26, %c0_27] : memref<2x10x6x256xf32, #tpu.memory_space<vmem>>, vector<2x10x2x256xf32>
    tpu.vector_store %arg3[%c0_24, %c0_25, %c4_26, %c0_27], %8 {strides = array<i32>} : memref<2x10x6x256xf32, #tpu.memory_space<vmem>>, vector<2x10x2x256xf32>,
    return
  }
  func.func @transform_0(%arg0: i32, %arg1: i32) -> (i32, i32, i32, i32) {
    %c0_i32 = arith.constant 0 : i32
    %c0_i32_0 = arith.constant 0 : i32
    %c0_i32_1 = arith.constant 0 : i32
    return %arg0, %c0_i32, %c0_i32_0, %arg1 : i32, i32, i32, i32
  }
  func.func @transform_1(%arg0: i32, %arg1: i32) -> (i32, i32, i32, i32) {
    %c0_i32 = arith.constant 0 : i32
    %c0_i32_0 = arith.constant 0 : i32
    %c0_i32_1 = arith.constant 0 : i32
    return %arg0, %c0_i32, %c0_i32_0, %arg1 : i32, i32, i32, i32
  }
}

</mosaic_0001>

<llo_original>
// kernel: tpu_custom_call.1
$region0: #{tpu_custom_call.1}
  #allocation0 [shape = 'u32[]', space=smem, size = 0x4, offset = 0x4, fixed_abs, tag = 'smem constant byte address 0x4 - core index']
  #allocation1 [shape = 'u32[144,128]{1,0:T(1,128)}', space=vmem, size = 0x12000, scoped, tag = 'internal scratch']
  %s0 = inlined_call_operand.vmem [shape: f32[2,10,6,256], index: 0, kind: input, shape index: {}]
  %s1 = inlined_call_operand.vmem [shape: f32[2,10,6,256], index: 1, kind: output, shape index: {}]
  %s2 = sld [smem:[#allocation0]]
  $region14: #{tpu_custom_call.1} parent=0
    _
  %s4 = ssub.s32 1, %s2
  %s5 = scalar_select 0, %s4, %s2
  // Predicated region
  $region2: #{tpu_custom_call.1} parent=0 // pred_check
    _
  $region3: #{tpu_custom_call.1} parent=0 // pred_check_branch
    %7 = sbr.rel (0) target = $region5
  $region4: #{tpu_custom_call.1} parent=0 // pred_region
    _
  $region5: #{tpu_custom_call.1} parent=0 // pred_fallthru
    _
  %s8 = scalar_lea.vmem %s0, 16
  %v9 = vld [vmem:[%s8] sm:$0x3]
  %v10 = vld [vmem:[%s8 + $0x8] sm:$0x3]
  %v11 = vld [vmem:[%s8 + $0x10] sm:$0x3]
  %v12 = vld [vmem:[%s8 + $0x18] sm:$0x3]
  %v13 = vld [vmem:[%s8 + $0x20] sm:$0x3]
  %v14 = vld [vmem:[%s8 + $0x28] sm:$0x3]
  %v15 = vld [vmem:[%s8 + $0x30] sm:$0x3]
  %v16 = vld [vmem:[%s8 + $0x38] sm:$0x3]
  %v17 = vld [vmem:[%s8 + $0x40] sm:$0x3]
  %v18 = vld [vmem:[%s8 + $0x48] sm:$0x3]
  %v19 = vld [vmem:[%s8 + $0x50] sm:$0x3]
  %v20 = vld [vmem:[%s8 + $0x58] sm:$0x3]
  %v21 = vld [vmem:[%s8 + $0x60] sm:$0x3]
  %v22 = vld [vmem:[%s8 + $0x68] sm:$0x3]
  %v23 = vld [vmem:[%s8 + $0x70] sm:$0x3]
  %v24 = vld [vmem:[%s8 + $0x78] sm:$0x3]
  %v25 = vld [vmem:[%s8 + $0x80] sm:$0x3]
  %v26 = vld [vmem:[%s8 + $0x88] sm:$0x3]
  %v27 = vld [vmem:[%s8 + $0xa0] sm:$0x3]
  %v28 = vld [vmem:[%s8 + $0xa8] sm:$0x3]
  %v29 = vld [vmem:[%s8 + $0xb0] sm:$0x3]
  %v30 = vld [vmem:[%s8 + $0xb8] sm:$0x3]
  %v31 = vld [vmem:[%s8 + $0xc0] sm:$0x3]
  %v32 = vld [vmem:[%s8 + $0xc8] sm:$0x3]
  %v33 = vld [vmem:[%s8 + $0xd0] sm:$0x3]
  %v34 = vld [vmem:[%s8 + $0xd8] sm:$0x3]
  %v35 = vld [vmem:[%s8 + $0xe0] sm:$0x3]
  %v36 = vld [vmem:[%s8 + $0xe8] sm:$0x3]
  %v37 = vld [vmem:[%s8 + $0xf0] sm:$0x3]
  %v38 = vld [vmem:[%s8 + $0xf8] sm:$0x3]
  %v39 = vld [vmem:[%s8 + $0x100] sm:$0x3]
  %v40 = vld [vmem:[%s8 + $0x108] sm:$0x3]
  %v41 = vld [vmem:[%s8 + $0x110] sm:$0x3]
  %v42 = vld [vmem:[%s8 + $0x118] sm:$0x3]
  %v43 = vld [vmem:[%s8 + $0x120] sm:$0x3]
  %v44 = vld [vmem:[%s8 + $0x128] sm:$0x3]
  %45 = vst [vmem:[%s1] sm:$0x3] %v9
  %46 = vst [vmem:[%s1 + $0x8] sm:$0x3] %v10
  %47 = vst [vmem:[%s1 + $0x10] sm:$0x3] %v11
  %48 = vst [vmem:[%s1 + $0x18] sm:$0x3] %v12
  %49 = vst [vmem:[%s1 + $0x20] sm:$0x3] %v13
  %50 = vst [vmem:[%s1 + $0x28] sm:$0x3] %v14
  %51 = vst [vmem:[%s1 + $0x30] sm:$0x3] %v15
  %52 = vst [vmem:[%s1 + $0x38] sm:$0x3] %v16
  %53 = vst [vmem:[%s1 + $0x40] sm:$0x3] %v17
  %54 = vst [vmem:[%s1 + $0x48] sm:$0x3] %v18
  %55 = vst [vmem:[%s1 + $0x50] sm:$0x3] %v19
  %56 = vst [vmem:[%s1 + $0x58] sm:$0x3] %v20
  %57 = vst [vmem:[%s1 + $0x60] sm:$0x3] %v21
  %58 = vst [vmem:[%s1 + $0x68] sm:$0x3] %v22
  %59 = vst [vmem:[%s1 + $0x70] sm:$0x3] %v23
  %60 = vst [vmem:[%s1 + $0x78] sm:$0x3] %v24
  %61 = vst [vmem:[%s1 + $0x80] sm:$0x3] %v25
  %62 = vst [vmem:[%s1 + $0x88] sm:$0x3] %v26
  %63 = vst [vmem:[%s1 + $0xa0] sm:$0x3] %v27
  %64 = vst [vmem:[%s1 + $0xa8] sm:$0x3] %v28
  %65 = vst [vmem:[%s1 + $0xb0] sm:$0x3] %v29
  %66 = vst [vmem:[%s1 + $0xb8] sm:$0x3] %v30
  %67 = vst [vmem:[%s1 + $0xc0] sm:$0x3] %v31
  %68 = vst [vmem:[%s1 + $0xc8] sm:$0x3] %v32
  %69 = vst [vmem:[%s1 + $0xd0] sm:$0x3] %v33
  %70 = vst [vmem:[%s1 + $0xd8] sm:$0x3] %v34
  %71 = vst [vmem:[%s1 + $0xe0] sm:$0x3] %v35
  %72 = vst [vmem:[%s1 + $0xe8] sm:$0x3] %v36
  %73 = vst [vmem:[%s1 + $0xf0] sm:$0x3] %v37
  %74 = vst [vmem:[%s1 + $0xf8] sm:$0x3] %v38
  %75 = vst [vmem:[%s1 + $0x100] sm:$0x3] %v39
  %76 = vst [vmem:[%s1 + $0x108] sm:$0x3] %v40
  %77 = vst [vmem:[%s1 + $0x110] sm:$0x3] %v41
  %78 = vst [vmem:[%s1 + $0x118] sm:$0x3] %v42
  %79 = vst [vmem:[%s1 + $0x120] sm:$0x3] %v43
  %80 = vst [vmem:[%s1 + $0x128] sm:$0x3] %v44
  %s81 = scalar_lea.vmem %s1, 144
  %82 = vst [vmem:[%s81] sm:$0x3] 0.0
  %83 = vst [vmem:[%s81 + $0x8] sm:$0x3] 0.0
  %84 = vst [vmem:[%s81 + $0xa0] sm:$0x3] 0.0
  %85 = vst [vmem:[%s81 + $0xa8] sm:$0x3] 0.0
  %v86 = vld [vmem:[%s0] sm:$0xc]
  %v87 = vld [vmem:[%s0 + $0x8] sm:$0xc]
  %v88 = vld [vmem:[%s0 + $0x10] sm:$0xc]
  %v89 = vld [vmem:[%s0 + $0x18] sm:$0xc]
  %v90 = vld [vmem:[%s0 + $0x20] sm:$0xc]
  %v91 = vld [vmem:[%s0 + $0x28] sm:$0xc]
  %v92 = vld [vmem:[%s0 + $0x30] sm:$0xc]
  %v93 = vld [vmem:[%s0 + $0x38] sm:$0xc]
  %v94 = vld [vmem:[%s0 + $0x40] sm:$0xc]
  %v95 = vld [vmem:[%s0 + $0x48] sm:$0xc]
  %v96 = vld [vmem:[%s0 + $0x50] sm:$0xc]
  %v97 = vld [vmem:[%s0 + $0x58] sm:$0xc]
  %v98 = vld [vmem:[%s0 + $0x60] sm:$0xc]
  %v99 = vld [vmem:[%s0 + $0x68] sm:$0xc]
  %v100 = vld [vmem:[%s0 + $0x70] sm:$0xc]
  %v101 = vld [vmem:[%s0 + $0x78] sm:$0xc]
  %v102 = vld [vmem:[%s0 + $0x80] sm:$0xc]
  %v103 = vld [vmem:[%s0 + $0x88] sm:$0xc]
  %v104 = vld [vmem:[%s0 + $0xa0] sm:$0xc]
  %v105 = vld [vmem:[%s0 + $0xa8] sm:$0xc]
  %v106 = vld [vmem:[%s0 + $0xb0] sm:$0xc]
  %v107 = vld [vmem:[%s0 + $0xb8] sm:$0xc]
  %v108 = vld [vmem:[%s0 + $0xc0] sm:$0xc]
  %v109 = vld [vmem:[%s0 + $0xc8] sm:$0xc]
  %v110 = vld [vmem:[%s0 + $0xd0] sm:$0xc]
  %v111 = vld [vmem:[%s0 + $0xd8] sm:$0xc]
  %v112 = vld [vmem:[%s0 + $0xe0] sm:$0xc]
  %v113 = vld [vmem:[%s0 + $0xe8] sm:$0xc]
  %v114 = vld [vmem:[%s0 + $0xf0] sm:$0xc]
  %v115 = vld [vmem:[%s0 + $0xf8] sm:$0xc]
  %v116 = vld [vmem:[%s0 + $0x100] sm:$0xc]
  %v117 = vld [vmem:[%s0 + $0x108] sm:$0xc]
  %v118 = vld [vmem:[%s0 + $0x110] sm:$0xc]
  %v119 = vld [vmem:[%s0 + $0x118] sm:$0xc]
  %v120 = vld [vmem:[%s0 + $0x120] sm:$0xc]
  %v121 = vld [vmem:[%s0 + $0x128] sm:$0xc]
  %s122 = scalar_lea.vmem %s1, 16
  %123 = vst [vmem:[%s122] sm:$0xc] %v86
  %124 = vst [vmem:[%s122 + $0x8] sm:$0xc] %v87
  %125 = vst [vmem:[%s122 + $0x10] sm:$0xc] %v88
  %126 = vst [vmem:[%s122 + $0x18] sm:$0xc] %v89
  %127 = vst [vmem:[%s122 + $0x20] sm:$0xc] %v90
  %128 = vst [vmem:[%s122 + $0x28] sm:$0xc] %v91
  %129 = vst [vmem:[%s122 + $0x30] sm:$0xc] %v92
  %130 = vst [vmem:[%s122 + $0x38] sm:$0xc] %v93
  %131 = vst [vmem:[%s122 + $0x40] sm:$0xc] %v94
  %132 = vst [vmem:[%s122 + $0x48] sm:$0xc] %v95
  %133 = vst [vmem:[%s122 + $0x50] sm:$0xc] %v96
  %134 = vst [vmem:[%s122 + $0x58] sm:$0xc] %v97
  %135 = vst [vmem:[%s122 + $0x60] sm:$0xc] %v98
  %136 = vst [vmem:[%s122 + $0x68] sm:$0xc] %v99
  %137 = vst [vmem:[%s122 + $0x70] sm:$0xc] %v100
  %138 = vst [vmem:[%s122 + $0x78] sm:$0xc] %v101
  %139 = vst [vmem:[%s122 + $0x80] sm:$0xc] %v102
  %140 = vst [vmem:[%s122 + $0x88] sm:$0xc] %v103
  %141 = vst [vmem:[%s122 + $0xa0] sm:$0xc] %v104
  %142 = vst [vmem:[%s122 + $0xa8] sm:$0xc] %v105
  %143 = vst [vmem:[%s122 + $0xb0] sm:$0xc] %v106
  %144 = vst [vmem:[%s122 + $0xb8] sm:$0xc] %v107
  %145 = vst [vmem:[%s122 + $0xc0] sm:$0xc] %v108
  %146 = vst [vmem:[%s122 + $0xc8] sm:$0xc] %v109
  %147 = vst [vmem:[%s122 + $0xd0] sm:$0xc] %v110
  %148 = vst [vmem:[%s122 + $0xd8] sm:$0xc] %v111
  %149 = vst [vmem:[%s122 + $0xe0] sm:$0xc] %v112
  %150 = vst [vmem:[%s122 + $0xe8] sm:$0xc] %v113
  %151 = vst [vmem:[%s122 + $0xf0] sm:$0xc] %v114
  %152 = vst [vmem:[%s122 + $0xf8] sm:$0xc] %v115
  %153 = vst [vmem:[%s122 + $0x100] sm:$0xc] %v116
  %154 = vst [vmem:[%s122 + $0x108] sm:$0xc] %v117
  %155 = vst [vmem:[%s122 + $0x110] sm:$0xc] %v118
  %156 = vst [vmem:[%s122 + $0x118] sm:$0xc] %v119
  %157 = vst [vmem:[%s122 + $0x120] sm:$0xc] %v120
  %158 = vst [vmem:[%s122 + $0x128] sm:$0xc] %v121
  %159 = vst [vmem:[%s1] sm:$0xc] 0.0
  %160 = vst [vmem:[%s1 + $0x8] sm:$0xc] 0.0
  %161 = vst [vmem:[%s1 + $0xa0] sm:$0xc] 0.0
  %162 = vst [vmem:[%s1 + $0xa8] sm:$0xc] 0.0
  %v163 = vld [vmem:[%s0] sm:$0x30]
  %v164 = vld [vmem:[%s0 + $0x8] sm:$0x30]
  %v165 = vld [vmem:[%s0 + $0x10] sm:$0x30]
  %v166 = vld [vmem:[%s0 + $0x18] sm:$0x30]
  %v167 = vld [vmem:[%s0 + $0x20] sm:$0x30]
  %v168 = vld [vmem:[%s0 + $0x28] sm:$0x30]
  %v169 = vld [vmem:[%s0 + $0x30] sm:$0x30]
  %v170 = vld [vmem:[%s0 + $0x38] sm:$0x30]
  %v171 = vld [vmem:[%s0 + $0x40] sm:$0x30]
  %v172 = vld [vmem:[%s0 + $0x48] sm:$0x30]
  %v173 = vld [vmem:[%s0 + $0x50] sm:$0x30]
  %v174 = vld [vmem:[%s0 + $0x58] sm:$0x30]
  %v175 = vld [vmem:[%s0 + $0x60] sm:$0x30]
  %v176 = vld [vmem:[%s0 + $0x68] sm:$0x30]
  %v177 = vld [vmem:[%s0 + $0x70] sm:$0x30]
  %v178 = vld [vmem:[%s0 + $0x78] sm:$0x30]
  %v179 = vld [vmem:[%s0 + $0x80] sm:$0x30]
  %v180 = vld [vmem:[%s0 + $0x88] sm:$0x30]
  %v181 = vld [vmem:[%s0 + $0x90] sm:$0x30]
  %v182 = vld [vmem:[%s0 + $0x98] sm:$0x30]
  %v183 = vld [vmem:[%s0 + $0xa0] sm:$0x30]
  %v184 = vld [vmem:[%s0 + $0xa8] sm:$0x30]
  %v185 = vld [vmem:[%s0 + $0xb0] sm:$0x30]
  %v186 = vld [vmem:[%s0 + $0xb8] sm:$0x30]
  %v187 = vld [vmem:[%s0 + $0xc0] sm:$0x30]
  %v188 = vld [vmem:[%s0 + $0xc8] sm:$0x30]
  %v189 = vld [vmem:[%s0 + $0xd0] sm:$0x30]
  %v190 = vld [vmem:[%s0 + $0xd8] sm:$0x30]
  %v191 = vld [vmem:[%s0 + $0xe0] sm:$0x30]
  %v192 = vld [vmem:[%s0 + $0xe8] sm:$0x30]
  %v193 = vld [vmem:[%s0 + $0xf0] sm:$0x30]
  %v194 = vld [vmem:[%s0 + $0xf8] sm:$0x30]
  %v195 = vld [vmem:[%s0 + $0x100] sm:$0x30]
  %v196 = vld [vmem:[%s0 + $0x108] sm:$0x30]
  %v197 = vld [vmem:[%s0 + $0x110] sm:$0x30]
  %v198 = vld [vmem:[%s0 + $0x118] sm:$0x30]
  %v199 = vld [vmem:[%s0 + $0x120] sm:$0x30]
  %v200 = vld [vmem:[%s0 + $0x128] sm:$0x30]
  %v201 = vld [vmem:[%s0 + $0x130] sm:$0x30]
  %v202 = vld [vmem:[%s0 + $0x138] sm:$0x30]
  %203 = vst [vmem:[%s1] sm:$0x30] %v163
  %204 = vst [vmem:[%s1 + $0x8] sm:$0x30] %v164
  %205 = vst [vmem:[%s1 + $0x10] sm:$0x30] %v165
  %206 = vst [vmem:[%s1 + $0x18] sm:$0x30] %v166
  %207 = vst [vmem:[%s1 + $0x20] sm:$0x30] %v167
  %208 = vst [vmem:[%s1 + $0x28] sm:$0x30] %v168
  %209 = vst [vmem:[%s1 + $0x30] sm:$0x30] %v169
  %210 = vst [vmem:[%s1 + $0x38] sm:$0x30] %v170
  %211 = vst [vmem:[%s1 + $0x40] sm:$0x30] %v171
  %212 = vst [vmem:[%s1 + $0x48] sm:$0x30] %v172
  %213 = vst [vmem:[%s1 + $0x50] sm:$0x30] %v173
  %214 = vst [vmem:[%s1 + $0x58] sm:$0x30] %v174
  %215 = vst [vmem:[%s1 + $0x60] sm:$0x30] %v175
  %216 = vst [vmem:[%s1 + $0x68] sm:$0x30] %v176
  %217 = vst [vmem:[%s1 + $0x70] sm:$0x30] %v177
  %218 = vst [vmem:[%s1 + $0x78] sm:$0x30] %v178
  %219 = vst [vmem:[%s1 + $0x80] sm:$0x30] %v179
  %220 = vst [vmem:[%s1 + $0x88] sm:$0x30] %v180
  %221 = vst [vmem:[%s1 + $0x90] sm:$0x30] %v181
  %222 = vst [vmem:[%s1 + $0x98] sm:$0x30] %v182
  %223 = vst [vmem:[%s1 + $0xa0] sm:$0x30] %v183
  %224 = vst [vmem:[%s1 + $0xa8] sm:$0x30] %v184
  %225 = vst [vmem:[%s1 + $0xb0] sm:$0x30] %v185
  %226 = vst [vmem:[%s1 + $0xb8] sm:$0x30] %v186
  %227 = vst [vmem:[%s1 + $0xc0] sm:$0x30] %v187
  %228 = vst [vmem:[%s1 + $0xc8] sm:$0x30] %v188
  %229 = vst [vmem:[%s1 + $0xd0] sm:$0x30] %v189
  %230 = vst [vmem:[%s1 + $0xd8] sm:$0x30] %v190
  %231 = vst [vmem:[%s1 + $0xe0] sm:$0x30] %v191
  %232 = vst [vmem:[%s1 + $0xe8] sm:$0x30] %v192
  %233 = vst [vmem:[%s1 + $0xf0] sm:$0x30] %v193
  %234 = vst [vmem:[%s1 + $0xf8] sm:$0x30] %v194
  %235 = vst [vmem:[%s1 + $0x100] sm:$0x30] %v195
  %236 = vst [vmem:[%s1 + $0x108] sm:$0x30] %v196
  %237 = vst [vmem:[%s1 + $0x110] sm:$0x30] %v197
  %238 = vst [vmem:[%s1 + $0x118] sm:$0x30] %v198
  %239 = vst [vmem:[%s1 + $0x120] sm:$0x30] %v199
  %240 = vst [vmem:[%s1 + $0x128] sm:$0x30] %v200
  %241 = vst [vmem:[%s1 + $0x130] sm:$0x30] %v201
  %242 = vst [vmem:[%s1 + $0x138] sm:$0x30] %v202
  // Predicated region
  $region6: #{tpu_custom_call.1} parent=0 // pred_check
    _
  $region7: #{tpu_custom_call.1} parent=0 // pred_check_branch
    %244 = sbr.rel (0) target = $region9
  $region8: #{tpu_custom_call.1} parent=0 // pred_region
    _
  $region9: #{tpu_custom_call.1} parent=0 // pred_fallthru
    _
  // Predicated region
  $region10: #{tpu_custom_call.1} parent=0 // pred_check
    _
  $region11: #{tpu_custom_call.1} parent=0 // pred_check_branch
    %246 = sbr.rel (0) target = $region13
  $region12: #{tpu_custom_call.1} parent=0 // pred_region
    _
  $region13: #{tpu_custom_call.1} parent=0 // pred_fallthru
    _

</llo_original>
